<compile_context>
chip_gen: v7x
topology: tpu7x:2x2x1
jax: 0.10.0
libtpu: 0.0.40
codegen_flags: <defaults>
</compile_context>

<pallas_src>
from functools import partial

import numpy as np
import jax
import jax.numpy as jnp
from jax.experimental import pallas as pl
from jax.experimental.pallas import tpu as pltpu

N_PAD = 128        # node axis padded to one full lane group (lane-dense everywhere)
BN_EPS = 1e-5


# ------------------------------------------------------------------ helpers
def _bilinear_matrix(H):
    """(2H, H) interpolation matrix matching PyTorch bilinear upsample x2,
    align_corners=False (half-pixel centers, negative src clamped to 0)."""
    U = np.zeros((2 * H, H), np.float32)
    for d in range(2 * H):
        s = (d + 0.5) / 2.0 - 0.5
        s = max(s, 0.0)
        i0 = int(np.floor(s))
        i1 = min(i0 + 1, H - 1)
        lam = s - i0
        U[d, i0] += 1.0 - lam
        U[d, i1] += lam
    return U


# ------------------------------------------------------------------ fused kernel
def _fused_up_block_kernel(x_ref, g_ref, br_ref, sT_ref, w1_ref, w2_ref, p_ref,
                           o_ref, *, n_valid):
    """Fused: (upsample+crop+gather) -> concat(bridge) -> [GCN(k=3)+ReLU+BN] x2.

    x_ref  : (B, Cx, H*W)    bf16   input pixels (channel rows, pixel lanes)
    g_ref  : (H*W, N_PAD)    bf16   fused upsample+crop+gather matrix (zero-padded cols)
    br_ref : (B, Cb, N_PAD)  bf16   bridge features (zero-padded lanes)
    sT_ref : (N_PAD, N_PAD)  bf16   support^T, zero-padded
    w1_ref : (Cout, 3*Cin1)  bf16   fused Chebyshev weights, layer 1 (order k-major)
    w2_ref : (Cout, 3*Cout)  bf16   fused Chebyshev weights, layer 2
    p_ref  : (Cout, 8)       f32    packed [b1, g1, bt1, b2, g2, bt2, 0, 0]
    o_ref  : (B*Cout, N_PAD) f32    output, batch-major rows
    """
    B = x_ref.shape[0]
    n_pad = sT_ref.shape[0]

    # Lane mask for the padded nodes; BN statistics use the true count.
    lane = jax.lax.broadcasted_iota(jnp.int32, (1, n_pad), 1)
    mask = (lane < n_valid).astype(jnp.float32)
    inv_count = 1.0 / float(B * n_valid)

    g = g_ref[...]
    sT = sT_ref[...]
    w1 = w1_ref[...]
    w2 = w2_ref[...]
    b1, ga1, be1 = p_ref[:, 0:1], p_ref[:, 1:2], p_ref[:, 2:3]
    b2, ga2, be2 = p_ref[:, 3:4], p_ref[:, 4:5], p_ref[:, 5:6]

    def cheb_linear_relu(x0_bf, w_bf, bias):
        # Chebyshev K=3 node mixing on the lane axis; ONE fused weight matmul.
        x1 = jnp.dot(x0_bf, sT, preferred_element_type=jnp.float32)
        x1_bf = x1.astype(jnp.bfloat16)
        x2 = (2.0 * jnp.dot(x1_bf, sT, preferred_element_type=jnp.float32)
              - x0_bf.astype(jnp.float32))
        xs = jnp.concatenate([x0_bf, x1_bf, x2.astype(jnp.bfloat16)], axis=0)
        y = jnp.dot(w_bf, xs, preferred_element_type=jnp.float32) + bias
        return jnp.maximum(y, 0.0)                                   # ReLU

    def batchnorm(ys, gamma, beta):
        # Per-channel batch stats over (batch, valid nodes); biased variance.
        mean = sum(jnp.sum(y * mask, axis=1, keepdims=True) for y in ys) * inv_count
        var = sum(jnp.sum(((y - mean) * mask) ** 2, axis=1, keepdims=True)
                  for y in ys) * inv_count
        inv = jax.lax.rsqrt(var + BN_EPS)
        # Zero padded lanes so nothing leaks into the next layer.
        return [((y - mean) * inv * gamma + beta) * mask for y in ys]

    # ---- layer 1: gather-upsample -> concat(bridge) -> GCN -> ReLU, per batch
    ys = []
    for b in range(B):                         # static unroll (B is tiny)
        up = jnp.dot(x_ref[b], g, preferred_element_type=jnp.float32)   # (Cx, N_PAD)
        x0 = jnp.concatenate([up.astype(jnp.bfloat16), br_ref[b]], axis=0)  # in regs
        ys.append(cheb_linear_relu(x0, w1, b1))
    h1 = batchnorm(ys, ga1, be1)

    # ---- layer 2: GCN -> ReLU -> BN ----------------------------------------
    ys2 = [cheb_linear_relu(h1[b].astype(jnp.bfloat16), w2, b2) for b in range(B)]
    h2 = batchnorm(ys2, ga2, be2)

    # One full-tile, unmasked, lane-dense store.
    o_ref[...] = jnp.concatenate(h2, axis=0)


# ------------------------------------------------------------------ forward wrapper
@partial(jax.jit, static_argnames=("height_width",))
def unet_up_block_forward(params, x, bridge, support, node_pos, height_width):
    B, Cx, H, W = x.shape
    _, Cb, N = bridge.shape
    Cin1 = Cx + Cb
    K = 3
    Cout = params["w1"].shape[0]
    th, tw = height_width
    dy, dx = (2 * H - th) // 2, (2 * W - tw) // 2
    HW = H * W

    # Fused bilinear-x2-upsample + center-crop + node-gather as ONE (HW, N_PAD)
    # matrix; column n holds the <=2x2 bilinear weights of node n's source pixel.
    uh = jnp.asarray(_bilinear_matrix(H))                       # (2H, H)
    uw = jnp.asarray(_bilinear_matrix(W))                       # (2W, W)
    rows = uh[dy + node_pos[:, 0], :]                           # (N, H)
    cols = uw[dx + node_pos[:, 1], :]                           # (N, W)
    g = (rows[:, :, None] * cols[:, None, :]).reshape(N, HW)
    g_pad = jnp.zeros((HW, N_PAD), jnp.float32).at[:, :N].set(g.T).astype(jnp.bfloat16)
    # TODO(synk): at larger H*W replace this dense matrix with a scalar-prefetch
    # gather of the <=2x2 source pixels per node (only ~4 nonzeros per column).

    sT_pad = jnp.zeros((N_PAD, N_PAD), jnp.float32).at[:N, :N].set(support.T)
    sT_pad = sT_pad.astype(jnp.bfloat16)

    x_p = x.reshape(B, Cx, HW).astype(jnp.bfloat16)             # free reshape, no transpose
    br_p = jnp.pad(bridge, ((0, 0), (0, 0), (0, N_PAD - N))).astype(jnp.bfloat16)

    # nn.Linear weight (Cout, Cin*K), feature index cin*K + k  ->  (Cout, K*Cin),
    # matching the in-kernel stacking order [x0; x1; x2].
    def fuse_w(w, cin):
        return (w.reshape(Cout, cin, K).transpose(0, 2, 1)
                .reshape(Cout, K * cin).astype(jnp.bfloat16))
    w1f, w2f = fuse_w(params["w1"], Cin1), fuse_w(params["w2"], Cout)

    zeros = jnp.zeros((Cout,), jnp.float32)
    pvec = jnp.stack([params["b1"], params["g1"], params["bt1"],
                      params["b2"], params["g2"], params["bt2"],
                      zeros, zeros], axis=1).astype(jnp.float32)        # (Cout, 8)

    operands = (x_p, g_pad, br_p, sT_pad, w1f, w2f, pvec)
    flops = 2 * B * (Cx * HW * N_PAD
                     + 2 * Cin1 * N_PAD * N_PAD + Cout * 3 * Cin1 * N_PAD
                     + 2 * Cout * N_PAD * N_PAD + Cout * 3 * Cout * N_PAD)
    bytes_accessed = (sum(int(a.size) * a.dtype.itemsize for a in operands)
                      + B * Cout * N_PAD * 4)

    out = pl.pallas_call(
        partial(_fused_up_block_kernel, n_valid=N),
        out_shape=jax.ShapeDtypeStruct((B * Cout, N_PAD), jnp.float32),
        in_specs=[pl.BlockSpec(memory_space=pltpu.MemorySpace.VMEM)] * len(operands),
        out_specs=pl.BlockSpec(memory_space=pltpu.MemorySpace.VMEM),
        cost_estimate=pl.CostEstimate(flops=flops, transcendentals=2 * Cout,
                                      bytes_accessed=bytes_accessed),
    )(*operands)
    # TODO(synk): a batch-parallel grid (dimension_semantics=PARALLEL, 2x on v7x)
    # needs a cross-grid-step BatchNorm reduction; kept gridless at this toy B=2.

    return out.reshape(B, Cout, N_PAD)[:, :, :N]                # (B, Cout, N)


# ------------------------------------------------------------------ pure-JAX reference
def _gcn_ref(x, support, weight, bias, kernel_size=3):
    B, Cin, N = x.shape
    x0 = jnp.transpose(x, (2, 1, 0)).reshape(N, Cin * B)
    stack = x0[None]
    x1 = support @ x0
    if kernel_size > 1:
        stack = jnp.concatenate([stack, x1[None]], 0)
    for _ in range(2, kernel_size):
        x2 = 2.0 * (support @ x1) - x0
        stack = jnp.concatenate([stack, x2[None]], 0)
        x1, x0 = x2, x1
    xr = stack.reshape(kernel_size, N, Cin, B)
    xr = jnp.transpose(xr, (3, 1, 2, 0)).reshape(B * N, Cin * kernel_size)
    out = xr @ weight.T + bias
    return jnp.transpose(out.reshape(B, N, -1), (0, 2, 1))


def _relu_bn_ref(x, gamma, beta, eps=BN_EPS):
    x = jnp.maximum(x, 0.0)
    mean = x.mean(axis=(0, 2), keepdims=True)
    var = ((x - mean) ** 2).mean(axis=(0, 2), keepdims=True)
    return (x - mean) / jnp.sqrt(var + eps) * gamma.reshape(1, -1, 1) + beta.reshape(1, -1, 1)


def _forward_ref(raw, x, bridge, support, node_pos, height_width):
    B, C, H, W = x.shape
    uh = jnp.asarray(_bilinear_matrix(H))
    uw = jnp.asarray(_bilinear_matrix(W))
    up = jnp.einsum('oh,bchw,pw->bcop', uh, x, uw)
    th, tw = height_width
    dy, dx = (2 * H - th) // 2, (2 * W - tw) // 2
    up = up[:, :, dy:dy + th, dx:dx + tw]
    up = up[:, :, node_pos[:, 0], node_pos[:, 1]]
    out = jnp.concatenate([up, bridge], axis=1)
    out = _gcn_ref(out, support, raw["w1"], raw["b1"])
    out = _relu_bn_ref(out, raw["g1"], raw["bt1"])
    out = _gcn_ref(out, support, raw["w2"], raw["b2"])
    out = _relu_bn_ref(out, raw["g2"], raw["bt2"])
    return out


# ------------------------------------------------------------------ main
if __name__ == "__main__":
    key = jax.random.PRNGKey(0)
    B, Cin_x, H, W = 2, 4, 16, 16        # x: (batch, in_size, H, W)
    num_nodes = 8
    out_size = 4                         # UNetUpBlock(in_size=4, out_size=4)
    C_bridge = 2 * out_size - Cin_x      # concat channels must equal out_size*2
    height_width = (28, 28)
    K = 3

    ks = jax.random.split(key, 12)
    x = jax.random.normal(ks[0], (B, Cin_x, H, W), jnp.float32)
    bridge = jax.random.normal(ks[1], (B, C_bridge, num_nodes), jnp.float32)
    support = jax.random.normal(ks[2], (num_nodes, num_nodes), jnp.float32) * 0.3
    node_pos = jax.random.randint(ks[3], (num_nodes, 2), 0, height_width[0], dtype=jnp.int32)

    Cin1 = out_size * 2
    params = {
        # nn.Linear-layout weights (Cout, Cin*K), feature index = cin*K + k
        "w1": jax.random.normal(ks[4], (out_size, Cin1 * K), jnp.float32) * 0.1,
        "b1": jax.random.normal(ks[5], (out_size,), jnp.float32) * 0.1,
        "w2": jax.random.normal(ks[6], (out_size, out_size * K), jnp.float32) * 0.1,
        "b2": jax.random.normal(ks[7], (out_size,), jnp.float32) * 0.1,
        "g1": 1.0 + 0.1 * jax.random.normal(ks[8], (out_size,), jnp.float32),
        "bt1": 0.1 * jax.random.normal(ks[9], (out_size,), jnp.float32),
        "g2": 1.0 + 0.1 * jax.random.normal(ks[10], (out_size,), jnp.float32),
        "bt2": 0.1 * jax.random.normal(ks[11], (out_size,), jnp.float32),
    }

    out = unet_up_block_forward(params, x, bridge, support, node_pos, height_width)
    out = jax.block_until_ready(out)

    ref = jax.block_until_ready(_forward_ref(params, x, bridge, support, node_pos, height_width))
    # bf16 MXU operands (f32 accumulation) -> ~1% agreement with the f32 reference.
    np.testing.assert_allclose(np.asarray(out), np.asarray(ref), rtol=2e-2, atol=2e-2)

    print("KERNEL_OK")
</pallas_src>

<mosaic_0001>
module attributes {stable_mosaic.version = 11 : i64} {
  func.func @_fused_up_block_kernel(%arg0: memref<2x4x256xbf16, #tpu.memory_space<vmem>>, %arg1: memref<256x128xbf16, #tpu.memory_space<vmem>>, %arg2: memref<2x4x128xbf16, #tpu.memory_space<vmem>>, %arg3: memref<128x128xbf16, #tpu.memory_space<vmem>>, %arg4: memref<4x24xbf16, #tpu.memory_space<vmem>>, %arg5: memref<4x12xbf16, #tpu.memory_space<vmem>>, %arg6: memref<4x8xf32, #tpu.memory_space<vmem>>, %arg7: memref<8x128xf32, #tpu.memory_space<vmem>>) attributes {dimension_semantics = [], scalar_prefetch = 0 : i64, scratch_operands = 0 : i64, tpu.core_type = #tpu.core_type<tc>} {
    %0 = tpu.iota {dimensions = array<i32: 1>} : vector<1x128xi32>
    %c8_i32 = arith.constant 8 : i32
    %1 = vector.broadcast %c8_i32 : i32 to vector<1x128xi32>
    %2 = arith.cmpi slt, %0, %1 : vector<1x128xi32>
    %3 = arith.extui %2 : vector<1x128xi1> to vector<1x128xi32>
    %4 = arith.sitofp %3 : vector<1x128xi32> to vector<1x128xf32>
    %c0 = arith.constant 0 : index
    %c0_0 = arith.constant 0 : index
    %5 = vector.load %arg1[%c0, %c0_0] : memref<256x128xbf16, #tpu.memory_space<vmem>>, vector<256x128xbf16>
    %c0_1 = arith.constant 0 : index
    %c0_2 = arith.constant 0 : index
    %6 = vector.load %arg3[%c0_1, %c0_2] : memref<128x128xbf16, #tpu.memory_space<vmem>>, vector<128x128xbf16>
    %c0_3 = arith.constant 0 : index
    %c0_4 = arith.constant 0 : index
    %7 = vector.load %arg4[%c0_3, %c0_4] : memref<4x24xbf16, #tpu.memory_space<vmem>>, vector<4x24xbf16>
    %c0_5 = arith.constant 0 : index
    %c0_6 = arith.constant 0 : index
    %8 = vector.load %arg5[%c0_5, %c0_6] : memref<4x12xbf16, #tpu.memory_space<vmem>>, vector<4x12xbf16>
    %c0_7 = arith.constant 0 : index
    %c0_8 = arith.constant 0 : index
    %9 = vector.load %arg6[%c0_7, %c0_8] : memref<4x8xf32, #tpu.memory_space<vmem>>, vector<4x1xf32>
    %c0_9 = arith.constant 0 : index
    %c1 = arith.constant 1 : index
    %10 = vector.load %arg6[%c0_9, %c1] : memref<4x8xf32, #tpu.memory_space<vmem>>, vector<4x1xf32>
    %c0_10 = arith.constant 0 : index
    %c2 = arith.constant 2 : index
    %11 = vector.load %arg6[%c0_10, %c2] : memref<4x8xf32, #tpu.memory_space<vmem>>, vector<4x1xf32>
    %c0_11 = arith.constant 0 : index
    %c3 = arith.constant 3 : index
    %12 = vector.load %arg6[%c0_11, %c3] : memref<4x8xf32, #tpu.memory_space<vmem>>, vector<4x1xf32>
    %c0_12 = arith.constant 0 : index
    %c4 = arith.constant 4 : index
    %13 = vector.load %arg6[%c0_12, %c4] : memref<4x8xf32, #tpu.memory_space<vmem>>, vector<4x1xf32>
    %c0_13 = arith.constant 0 : index
    %c5 = arith.constant 5 : index
    %14 = vector.load %arg6[%c0_13, %c5] : memref<4x8xf32, #tpu.memory_space<vmem>>, vector<4x1xf32>
    %c0_14 = arith.constant 0 : index
    %c0_15 = arith.constant 0 : index
    %c0_16 = arith.constant 0 : index
    %15 = vector.load %arg0[%c0_14, %c0_15, %c0_16] : memref<2x4x256xbf16, #tpu.memory_space<vmem>>, vector<1x4x256xbf16>
    %16 = vector.shape_cast %15 : vector<1x4x256xbf16> to vector<4x256xbf16>
    %cst = arith.constant dense<0.000000e+00> : vector<4x128xf32>
    %17 = tpu.matmul %16, %5, %cst {dimension_numbers = #tpu.dot_dimension_numbers<[1], [0], [0], [1], [0, 0, 1, 1], [], []>} : vector<4x256xbf16>, vector<256x128xbf16>, vector<4x128xf32> -> vector<4x128xf32>
    %18 = arith.truncf %17 : vector<4x128xf32> to vector<4x128xbf16>
    %c0_17 = arith.constant 0 : index
    %c0_18 = arith.constant 0 : index
    %c0_19 = arith.constant 0 : index
    %19 = vector.load %arg2[%c0_17, %c0_18, %c0_19] : memref<2x4x128xbf16, #tpu.memory_space<vmem>>, vector<1x4x128xbf16>
    %20 = vector.shape_cast %19 : vector<1x4x128xbf16> to vector<4x128xbf16>
    %21 = tpu.concatenate %18, %20 in 0 : vector<4x128xbf16>, vector<4x128xbf16> -> vector<8x128xbf16>
    %cst_20 = arith.constant dense<0.000000e+00> : vector<8x128xf32>
    %22 = tpu.matmul %21, %6, %cst_20 {dimension_numbers = #tpu.dot_dimension_numbers<[1], [0], [0], [1], [0, 0, 1, 1], [], []>} : vector<8x128xbf16>, vector<128x128xbf16>, vector<8x128xf32> -> vector<8x128xf32>
    %23 = arith.truncf %22 : vector<8x128xf32> to vector<8x128xbf16>
    %cst_21 = arith.constant dense<0.000000e+00> : vector<8x128xf32>
    %24 = tpu.matmul %23, %6, %cst_21 {dimension_numbers = #tpu.dot_dimension_numbers<[1], [0], [0], [1], [0, 0, 1, 1], [], []>} : vector<8x128xbf16>, vector<128x128xbf16>, vector<8x128xf32> -> vector<8x128xf32>
    %cst_22 = arith.constant 2.000000e+00 : f32
    %25 = vector.broadcast %cst_22 : f32 to vector<8x128xf32>
    %26 = arith.mulf %25, %24 : vector<8x128xf32>
    %27 = arith.extf %21 : vector<8x128xbf16> to vector<8x128xf32>
    %28 = arith.subf %26, %27 : vector<8x128xf32>
    %29 = arith.truncf %28 : vector<8x128xf32> to vector<8x128xbf16>
    %30 = tpu.concatenate %21, %23, %29 in 0 : vector<8x128xbf16>, vector<8x128xbf16>, vector<8x128xbf16> -> vector<24x128xbf16>
    %cst_23 = arith.constant dense<0.000000e+00> : vector<4x128xf32>
    %31 = tpu.matmul %7, %30, %cst_23 {dimension_numbers = #tpu.dot_dimension_numbers<[1], [0], [0], [1], [0, 0, 1, 1], [], []>} : vector<4x24xbf16>, vector<24x128xbf16>, vector<4x128xf32> -> vector<4x128xf32>
    %32 = vector.broadcast %9 : vector<4x1xf32> to vector<4x128xf32>
    %33 = arith.addf %31, %32 : vector<4x128xf32>
    %cst_24 = arith.constant 0.000000e+00 : f32
    %34 = vector.broadcast %cst_24 : f32 to vector<4x128xf32>
    %35 = arith.maximumf %33, %34 : vector<4x128xf32>
    %c1_25 = arith.constant 1 : index
    %c0_26 = arith.constant 0 : index
    %c0_27 = arith.constant 0 : index
    %36 = vector.load %arg0[%c1_25, %c0_26, %c0_27] : memref<2x4x256xbf16, #tpu.memory_space<vmem>>, vector<1x4x256xbf16>
    %37 = vector.shape_cast %36 : vector<1x4x256xbf16> to vector<4x256xbf16>
    %cst_28 = arith.constant dense<0.000000e+00> : vector<4x128xf32>
    %38 = tpu.matmul %37, %5, %cst_28 {dimension_numbers = #tpu.dot_dimension_numbers<[1], [0], [0], [1], [0, 0, 1, 1], [], []>} : vector<4x256xbf16>, vector<256x128xbf16>, vector<4x128xf32> -> vector<4x128xf32>
    %39 = arith.truncf %38 : vector<4x128xf32> to vector<4x128xbf16>
    %c1_29 = arith.constant 1 : index
    %c0_30 = arith.constant 0 : index
    %c0_31 = arith.constant 0 : index
    %40 = vector.load %arg2[%c1_29, %c0_30, %c0_31] : memref<2x4x128xbf16, #tpu.memory_space<vmem>>, vector<1x4x128xbf16>
    %41 = vector.shape_cast %40 : vector<1x4x128xbf16> to vector<4x128xbf16>
    %42 = tpu.concatenate %39, %41 in 0 : vector<4x128xbf16>, vector<4x128xbf16> -> vector<8x128xbf16>
    %cst_32 = arith.constant dense<0.000000e+00> : vector<8x128xf32>
    %43 = tpu.matmul %42, %6, %cst_32 {dimension_numbers = #tpu.dot_dimension_numbers<[1], [0], [0], [1], [0, 0, 1, 1], [], []>} : vector<8x128xbf16>, vector<128x128xbf16>, vector<8x128xf32> -> vector<8x128xf32>
    %44 = arith.truncf %43 : vector<8x128xf32> to vector<8x128xbf16>
    %cst_33 = arith.constant dense<0.000000e+00> : vector<8x128xf32>
    %45 = tpu.matmul %44, %6, %cst_33 {dimension_numbers = #tpu.dot_dimension_numbers<[1], [0], [0], [1], [0, 0, 1, 1], [], []>} : vector<8x128xbf16>, vector<128x128xbf16>, vector<8x128xf32> -> vector<8x128xf32>
    %cst_34 = arith.constant 2.000000e+00 : f32
    %46 = vector.broadcast %cst_34 : f32 to vector<8x128xf32>
    %47 = arith.mulf %46, %45 : vector<8x128xf32>
    %48 = arith.extf %42 : vector<8x128xbf16> to vector<8x128xf32>
    %49 = arith.subf %47, %48 : vector<8x128xf32>
    %50 = arith.truncf %49 : vector<8x128xf32> to vector<8x128xbf16>
    %51 = tpu.concatenate %42, %44, %50 in 0 : vector<8x128xbf16>, vector<8x128xbf16>, vector<8x128xbf16> -> vector<24x128xbf16>
    %cst_35 = arith.constant dense<0.000000e+00> : vector<4x128xf32>
    %52 = tpu.matmul %7, %51, %cst_35 {dimension_numbers = #tpu.dot_dimension_numbers<[1], [0], [0], [1], [0, 0, 1, 1], [], []>} : vector<4x24xbf16>, vector<24x128xbf16>, vector<4x128xf32> -> vector<4x128xf32>
    %53 = vector.broadcast %9 : vector<4x1xf32> to vector<4x128xf32>
    %54 = arith.addf %52, %53 : vector<4x128xf32>
    %cst_36 = arith.constant 0.000000e+00 : f32
    %55 = vector.broadcast %cst_36 : f32 to vector<4x128xf32>
    %56 = arith.maximumf %54, %55 : vector<4x128xf32>
    %57 = vector.broadcast %4 : vector<1x128xf32> to vector<4x128xf32>
    %58 = arith.mulf %35, %57 : vector<4x128xf32>
    %cst_37 = arith.constant dense<0.000000e+00> : vector<4xf32>
    %59 = vector.multi_reduction <add>, %58, %cst_37 [1] : vector<4x128xf32> to vector<4xf32>
    %60 = vector.shape_cast %59 : vector<4xf32> to vector<4x1xf32>
    %cst_38 = arith.constant 0.000000e+00 : f32
    %61 = vector.broadcast %cst_38 : f32 to vector<4x1xf32>
    %62 = arith.addf %61, %60 : vector<4x1xf32>
    %63 = vector.broadcast %4 : vector<1x128xf32> to vector<4x128xf32>
    %64 = arith.mulf %56, %63 : vector<4x128xf32>
    %cst_39 = arith.constant dense<0.000000e+00> : vector<4xf32>
    %65 = vector.multi_reduction <add>, %64, %cst_39 [1] : vector<4x128xf32> to vector<4xf32>
    %66 = vector.shape_cast %65 : vector<4xf32> to vector<4x1xf32>
    %67 = arith.addf %62, %66 : vector<4x1xf32>
    %cst_40 = arith.constant 6.250000e-02 : f32
    %68 = vector.broadcast %cst_40 : f32 to vector<4x1xf32>
    %69 = arith.mulf %67, %68 : vector<4x1xf32>
    %70 = vector.broadcast %69 : vector<4x1xf32> to vector<4x128xf32>
    %71 = arith.subf %35, %70 : vector<4x128xf32>
    %72 = vector.broadcast %4 : vector<1x128xf32> to vector<4x128xf32>
    %73 = arith.mulf %71, %72 : vector<4x128xf32>
    %74 = arith.mulf %73, %73 : vector<4x128xf32>
    %cst_41 = arith.constant dense<0.000000e+00> : vector<4xf32>
    %75 = vector.multi_reduction <add>, %74, %cst_41 [1] : vector<4x128xf32> to vector<4xf32>
    %76 = vector.shape_cast %75 : vector<4xf32> to vector<4x1xf32>
    %cst_42 = arith.constant 0.000000e+00 : f32
    %77 = vector.broadcast %cst_42 : f32 to vector<4x1xf32>
    %78 = arith.addf %77, %76 : vector<4x1xf32>
    %79 = vector.broadcast %69 : vector<4x1xf32> to vector<4x128xf32>
    %80 = arith.subf %56, %79 : vector<4x128xf32>
    %81 = vector.broadcast %4 : vector<1x128xf32> to vector<4x128xf32>
    %82 = arith.mulf %80, %81 : vector<4x128xf32>
    %83 = arith.mulf %82, %82 : vector<4x128xf32>
    %cst_43 = arith.constant dense<0.000000e+00> : vector<4xf32>
    %84 = vector.multi_reduction <add>, %83, %cst_43 [1] : vector<4x128xf32> to vector<4xf32>
    %85 = vector.shape_cast %84 : vector<4xf32> to vector<4x1xf32>
    %86 = arith.addf %78, %85 : vector<4x1xf32>
    %cst_44 = arith.constant 6.250000e-02 : f32
    %87 = vector.broadcast %cst_44 : f32 to vector<4x1xf32>
    %88 = arith.mulf %86, %87 : vector<4x1xf32>
    %cst_45 = arith.constant 9.99999974E-6 : f32
    %89 = vector.broadcast %cst_45 : f32 to vector<4x1xf32>
    %90 = arith.addf %88, %89 : vector<4x1xf32>
    %91 = math.rsqrt %90 : vector<4x1xf32>
    %92 = vector.broadcast %69 : vector<4x1xf32> to vector<4x128xf32>
    %93 = arith.subf %35, %92 : vector<4x128xf32>
    %94 = vector.broadcast %91 : vector<4x1xf32> to vector<4x128xf32>
    %95 = arith.mulf %93, %94 : vector<4x128xf32>
    %96 = vector.broadcast %10 : vector<4x1xf32> to vector<4x128xf32>
    %97 = arith.mulf %95, %96 : vector<4x128xf32>
    %98 = vector.broadcast %11 : vector<4x1xf32> to vector<4x128xf32>
    %99 = arith.addf %97, %98 : vector<4x128xf32>
    %100 = vector.broadcast %4 : vector<1x128xf32> to vector<4x128xf32>
    %101 = arith.mulf %99, %100 : vector<4x128xf32>
    %102 = vector.broadcast %69 : vector<4x1xf32> to vector<4x128xf32>
    %103 = arith.subf %56, %102 : vector<4x128xf32>
    %104 = vector.broadcast %91 : vector<4x1xf32> to vector<4x128xf32>
    %105 = arith.mulf %103, %104 : vector<4x128xf32>
    %106 = vector.broadcast %10 : vector<4x1xf32> to vector<4x128xf32>
    %107 = arith.mulf %105, %106 : vector<4x128xf32>
    %108 = vector.broadcast %11 : vector<4x1xf32> to vector<4x128xf32>
    %109 = arith.addf %107, %108 : vector<4x128xf32>
    %110 = vector.broadcast %4 : vector<1x128xf32> to vector<4x128xf32>
    %111 = arith.mulf %109, %110 : vector<4x128xf32>
    %112 = arith.truncf %101 : vector<4x128xf32> to vector<4x128xbf16>
    %cst_46 = arith.constant dense<0.000000e+00> : vector<4x128xf32>
    %113 = tpu.matmul %112, %6, %cst_46 {dimension_numbers = #tpu.dot_dimension_numbers<[1], [0], [0], [1], [0, 0, 1, 1], [], []>} : vector<4x128xbf16>, vector<128x128xbf16>, vector<4x128xf32> -> vector<4x128xf32>
    %114 = arith.truncf %113 : vector<4x128xf32> to vector<4x128xbf16>
    %cst_47 = arith.constant dense<0.000000e+00> : vector<4x128xf32>
    %115 = tpu.matmul %114, %6, %cst_47 {dimension_numbers = #tpu.dot_dimension_numbers<[1], [0], [0], [1], [0, 0, 1, 1], [], []>} : vector<4x128xbf16>, vector<128x128xbf16>, vector<4x128xf32> -> vector<4x128xf32>
    %cst_48 = arith.constant 2.000000e+00 : f32
    %116 = vector.broadcast %cst_48 : f32 to vector<4x128xf32>
    %117 = arith.mulf %116, %115 : vector<4x128xf32>
    %118 = arith.extf %112 : vector<4x128xbf16> to vector<4x128xf32>
    %119 = arith.subf %117, %118 : vector<4x128xf32>
    %120 = arith.truncf %119 : vector<4x128xf32> to vector<4x128xbf16>
    %121 = tpu.concatenate %112, %114, %120 in 0 : vector<4x128xbf16>, vector<4x128xbf16>, vector<4x128xbf16> -> vector<12x128xbf16>
    %cst_49 = arith.constant dense<0.000000e+00> : vector<4x128xf32>
    %122 = tpu.matmul %8, %121, %cst_49 {dimension_numbers = #tpu.dot_dimension_numbers<[1], [0], [0], [1], [0, 0, 1, 1], [], []>} : vector<4x12xbf16>, vector<12x128xbf16>, vector<4x128xf32> -> vector<4x128xf32>
    %123 = vector.broadcast %12 : vector<4x1xf32> to vector<4x128xf32>
    %124 = arith.addf %122, %123 : vector<4x128xf32>
    %cst_50 = arith.constant 0.000000e+00 : f32
    %125 = vector.broadcast %cst_50 : f32 to vector<4x128xf32>
    %126 = arith.maximumf %124, %125 : vector<4x128xf32>
    %127 = arith.truncf %111 : vector<4x128xf32> to vector<4x128xbf16>
    %cst_51 = arith.constant dense<0.000000e+00> : vector<4x128xf32>
    %128 = tpu.matmul %127, %6, %cst_51 {dimension_numbers = #tpu.dot_dimension_numbers<[1], [0], [0], [1], [0, 0, 1, 1], [], []>} : vector<4x128xbf16>, vector<128x128xbf16>, vector<4x128xf32> -> vector<4x128xf32>
    %129 = arith.truncf %128 : vector<4x128xf32> to vector<4x128xbf16>
    %cst_52 = arith.constant dense<0.000000e+00> : vector<4x128xf32>
    %130 = tpu.matmul %129, %6, %cst_52 {dimension_numbers = #tpu.dot_dimension_numbers<[1], [0], [0], [1], [0, 0, 1, 1], [], []>} : vector<4x128xbf16>, vector<128x128xbf16>, vector<4x128xf32> -> vector<4x128xf32>
    %cst_53 = arith.constant 2.000000e+00 : f32
    %131 = vector.broadcast %cst_53 : f32 to vector<4x128xf32>
    %132 = arith.mulf %131, %130 : vector<4x128xf32>
    %133 = arith.extf %127 : vector<4x128xbf16> to vector<4x128xf32>
    %134 = arith.subf %132, %133 : vector<4x128xf32>
    %135 = arith.truncf %134 : vector<4x128xf32> to vector<4x128xbf16>
    %136 = tpu.concatenate %127, %129, %135 in 0 : vector<4x128xbf16>, vector<4x128xbf16>, vector<4x128xbf16> -> vector<12x128xbf16>
    %cst_54 = arith.constant dense<0.000000e+00> : vector<4x128xf32>
    %137 = tpu.matmul %8, %136, %cst_54 {dimension_numbers = #tpu.dot_dimension_numbers<[1], [0], [0], [1], [0, 0, 1, 1], [], []>} : vector<4x12xbf16>, vector<12x128xbf16>, vector<4x128xf32> -> vector<4x128xf32>
    %138 = vector.broadcast %12 : vector<4x1xf32> to vector<4x128xf32>
    %139 = arith.addf %137, %138 : vector<4x128xf32>
    %cst_55 = arith.constant 0.000000e+00 : f32
    %140 = vector.broadcast %cst_55 : f32 to vector<4x128xf32>
    %141 = arith.maximumf %139, %140 : vector<4x128xf32>
    %142 = vector.broadcast %4 : vector<1x128xf32> to vector<4x128xf32>
    %143 = arith.mulf %126, %142 : vector<4x128xf32>
    %cst_56 = arith.constant dense<0.000000e+00> : vector<4xf32>
    %144 = vector.multi_reduction <add>, %143, %cst_56 [1] : vector<4x128xf32> to vector<4xf32>
    %145 = vector.shape_cast %144 : vector<4xf32> to vector<4x1xf32>
    %cst_57 = arith.constant 0.000000e+00 : f32
    %146 = vector.broadcast %cst_57 : f32 to vector<4x1xf32>
    %147 = arith.addf %146, %145 : vector<4x1xf32>
    %148 = vector.broadcast %4 : vector<1x128xf32> to vector<4x128xf32>
    %149 = arith.mulf %141, %148 : vector<4x128xf32>
    %cst_58 = arith.constant dense<0.000000e+00> : vector<4xf32>
    %150 = vector.multi_reduction <add>, %149, %cst_58 [1] : vector<4x128xf32> to vector<4xf32>
    %151 = vector.shape_cast %150 : vector<4xf32> to vector<4x1xf32>
    %152 = arith.addf %147, %151 : vector<4x1xf32>
    %cst_59 = arith.constant 6.250000e-02 : f32
    %153 = vector.broadcast %cst_59 : f32 to vector<4x1xf32>
    %154 = arith.mulf %152, %153 : vector<4x1xf32>
    %155 = vector.broadcast %154 : vector<4x1xf32> to vector<4x128xf32>
    %156 = arith.subf %126, %155 : vector<4x128xf32>
    %157 = vector.broadcast %4 : vector<1x128xf32> to vector<4x128xf32>
    %158 = arith.mulf %156, %157 : vector<4x128xf32>
    %159 = arith.mulf %158, %158 : vector<4x128xf32>
    %cst_60 = arith.constant dense<0.000000e+00> : vector<4xf32>
    %160 = vector.multi_reduction <add>, %159, %cst_60 [1] : vector<4x128xf32> to vector<4xf32>
    %161 = vector.shape_cast %160 : vector<4xf32> to vector<4x1xf32>
    %cst_61 = arith.constant 0.000000e+00 : f32
    %162 = vector.broadcast %cst_61 : f32 to vector<4x1xf32>
    %163 = arith.addf %162, %161 : vector<4x1xf32>
    %164 = vector.broadcast %154 : vector<4x1xf32> to vector<4x128xf32>
    %165 = arith.subf %141, %164 : vector<4x128xf32>
    %166 = vector.broadcast %4 : vector<1x128xf32> to vector<4x128xf32>
    %167 = arith.mulf %165, %166 : vector<4x128xf32>
    %168 = arith.mulf %167, %167 : vector<4x128xf32>
    %cst_62 = arith.constant dense<0.000000e+00> : vector<4xf32>
    %169 = vector.multi_reduction <add>, %168, %cst_62 [1] : vector<4x128xf32> to vector<4xf32>
    %170 = vector.shape_cast %169 : vector<4xf32> to vector<4x1xf32>
    %171 = arith.addf %163, %170 : vector<4x1xf32>
    %cst_63 = arith.constant 6.250000e-02 : f32
    %172 = vector.broadcast %cst_63 : f32 to vector<4x1xf32>
    %173 = arith.mulf %171, %172 : vector<4x1xf32>
    %cst_64 = arith.constant 9.99999974E-6 : f32
    %174 = vector.broadcast %cst_64 : f32 to vector<4x1xf32>
    %175 = arith.addf %173, %174 : vector<4x1xf32>
    %176 = math.rsqrt %175 : vector<4x1xf32>
    %177 = vector.broadcast %154 : vector<4x1xf32> to vector<4x128xf32>
    %178 = arith.subf %126, %177 : vector<4x128xf32>
    %179 = vector.broadcast %176 : vector<4x1xf32> to vector<4x128xf32>
    %180 = arith.mulf %178, %179 : vector<4x128xf32>
    %181 = vector.broadcast %13 : vector<4x1xf32> to vector<4x128xf32>
    %182 = arith.mulf %180, %181 : vector<4x128xf32>
    %183 = vector.broadcast %14 : vector<4x1xf32> to vector<4x128xf32>
    %184 = arith.addf %182, %183 : vector<4x128xf32>
    %185 = vector.broadcast %4 : vector<1x128xf32> to vector<4x128xf32>
    %186 = arith.mulf %184, %185 : vector<4x128xf32>
    %187 = vector.broadcast %154 : vector<4x1xf32> to vector<4x128xf32>
    %188 = arith.subf %141, %187 : vector<4x128xf32>
    %189 = vector.broadcast %176 : vector<4x1xf32> to vector<4x128xf32>
    %190 = arith.mulf %188, %189 : vector<4x128xf32>
    %191 = vector.broadcast %13 : vector<4x1xf32> to vector<4x128xf32>
    %192 = arith.mulf %190, %191 : vector<4x128xf32>
    %193 = vector.broadcast %14 : vector<4x1xf32> to vector<4x128xf32>
    %194 = arith.addf %192, %193 : vector<4x128xf32>
    %195 = vector.broadcast %4 : vector<1x128xf32> to vector<4x128xf32>
    %196 = arith.mulf %194, %195 : vector<4x128xf32>
    %197 = tpu.concatenate %186, %196 in 0 : vector<4x128xf32>, vector<4x128xf32> -> vector<8x128xf32>
    %c0_65 = arith.constant 0 : index
    %c0_66 = arith.constant 0 : index
    %198 = vector.load %arg7[%c0_65, %c0_66] : memref<8x128xf32, #tpu.memory_space<vmem>>, vector<8x128xf32>
    tpu.vector_store %arg7[%c0_65, %c0_66], %197 {strides = array<i32>} : memref<8x128xf32, #tpu.memory_space<vmem>>, vector<8x128xf32>,
    return
  }
}

</mosaic_0001>

<llo_original>
// kernel: unet_up_block_forward.1
$region0: #{unet_up_block_forward.1}
  #allocation0 [shape = 'u32[]', space=smem, size = 0x4, offset = 0x4, fixed_abs, tag = 'smem constant byte address 0x4 - core index']
  #allocation1 [shape = 'u32[144,128]{1,0:T(1,128)}', space=vmem, size = 0x12000, scoped, tag = 'internal scratch']
  %s0 = inlined_call_operand.vmem [shape: bf16[2,4,256], index: 0, kind: input, shape index: {}]
  %s1 = inlined_call_operand.vmem [shape: bf16[256,128], index: 1, kind: input, shape index: {}]
  %s2 = inlined_call_operand.vmem [shape: bf16[2,4,128], index: 2, kind: input, shape index: {}]
  %s3 = inlined_call_operand.vmem [shape: bf16[128,128], index: 3, kind: input, shape index: {}]
  %s4 = inlined_call_operand.vmem [shape: bf16[4,24], index: 4, kind: input, shape index: {}]
  %s5 = inlined_call_operand.vmem [shape: bf16[4,12], index: 5, kind: input, shape index: {}]
  %s6 = inlined_call_operand.vmem [shape: f32[4,8], index: 6, kind: input, shape index: {}]
  %s7 = inlined_call_operand.hbm [shape: f32[8,128], index: 7, kind: output, shape index: {}]
  %s8 = sld [smem:[#allocation0]]
  $region38: #{unet_up_block_forward.1} parent=0
    _
  %s10 = ssub.s32 1, %s8
  %s11 = scalar_select 0, %s10, %s8
  $region1: #{unet_up_block_forward.1} parent=0
    #allocation2 [shape = 'u8[4096]{0}', space=vmem, size = 0x1000, scoped, tag = 'output window, operand 0, single buffered']
    #allocation3 [shape = 's32[1]{0}', space=sflag, size = 0x4, scoped, tag = 'scoped memory for unet_up_block_forward.1']
    %12 = vsyncpa [#allocation3], 0
    // Predicated region
    $region2: #{unet_up_block_forward.1} parent=1 // pred_check
      _
    $region3: #{unet_up_block_forward.1} parent=1 // pred_check_branch
      %14 = sbr.rel (0) target = $region5
    $region4: #{unet_up_block_forward.1} parent=1 // pred_region
      _
    $region5: #{unet_up_block_forward.1} parent=1 // pred_fallthru
      _
    // Predicated region
    $region6: #{unet_up_block_forward.1} parent=1 // pred_check
      _
    $region7: #{unet_up_block_forward.1} parent=1 // pred_check_branch
      %16 = sbr.rel (0) target = $region9
    $region8: #{unet_up_block_forward.1} parent=1 // pred_region
      _
    $region9: #{unet_up_block_forward.1} parent=1 // pred_fallthru
      _
    // Predicated region
    $region10: #{unet_up_block_forward.1} parent=1 // pred_check
      _
    $region11: #{unet_up_block_forward.1} parent=1 // pred_check_branch
      %18 = sbr.rel (0) target = $region13
    $region12: #{unet_up_block_forward.1} parent=1 // pred_region
      _
    $region13: #{unet_up_block_forward.1} parent=1 // pred_fallthru
      _
    // Predicated region
    $region14: #{unet_up_block_forward.1} parent=1 // pred_check
      _
    $region15: #{unet_up_block_forward.1} parent=1 // pred_check_branch
      %20 = sbr.rel (0) target = $region17
    $region16: #{unet_up_block_forward.1} parent=1 // pred_region
      _
    $region17: #{unet_up_block_forward.1} parent=1 // pred_fallthru
      _
    // Predicated region
    $region18: #{unet_up_block_forward.1} parent=1 // pred_check
      _
    $region19: #{unet_up_block_forward.1} parent=1 // pred_check_branch
      %22 = sbr.rel (0) target = $region21
    $region20: #{unet_up_block_forward.1} parent=1 // pred_region
      _
    $region21: #{unet_up_block_forward.1} parent=1 // pred_fallthru
      _
    // Predicated region
    $region22: #{unet_up_block_forward.1} parent=1 // pred_check
      _
    $region23: #{unet_up_block_forward.1} parent=1 // pred_check_branch
      %24 = sbr.rel (0) target = $region25
    $region24: #{unet_up_block_forward.1} parent=1 // pred_region
      _
    $region25: #{unet_up_block_forward.1} parent=1 // pred_fallthru
      _
    // Predicated region
    $region26: #{unet_up_block_forward.1} parent=1 // pred_check
      _
    $region27: #{unet_up_block_forward.1} parent=1 // pred_check_branch
      %26 = sbr.rel (0) target = $region29
    $region28: #{unet_up_block_forward.1} parent=1 // pred_region
      _
    $region29: #{unet_up_block_forward.1} parent=1 // pred_fallthru
      _
    %v28 = vlaneseq
    %v29 = vand.u32 %v28, 127
    %vm30 = vcmp.lt.s32.totalorder %v29, 8
    %v31 = vsel %vm30, 1, 0
    %v32 = vcvt.s32.f32 %v31
    %v33 = vld [vmem:[%s1] sm:$0xf]
    %v34 = vld [vmem:[%s1 + $0x4] sm:$0xf]
    %v35 = vld [vmem:[%s1 + $0x8] sm:$0xf]
    %v36 = vld [vmem:[%s1 + $0xc] sm:$0xf]
    %v37 = vld [vmem:[%s1 + $0x10] sm:$0xf]
    %v38 = vld [vmem:[%s1 + $0x14] sm:$0xf]
    %v39 = vld [vmem:[%s1 + $0x18] sm:$0xf]
    %v40 = vld [vmem:[%s1 + $0x1c] sm:$0xf]
    %v41 = vld [vmem:[%s1 + $0x20] sm:$0xf]
    %v42 = vld [vmem:[%s1 + $0x24] sm:$0xf]
    %v43 = vld [vmem:[%s1 + $0x28] sm:$0xf]
    %v44 = vld [vmem:[%s1 + $0x2c] sm:$0xf]
    %v45 = vld [vmem:[%s1 + $0x30] sm:$0xf]
    %v46 = vld [vmem:[%s1 + $0x34] sm:$0xf]
    %v47 = vld [vmem:[%s1 + $0x38] sm:$0xf]
    %v48 = vld [vmem:[%s1 + $0x3c] sm:$0xf]
    %v49 = vld [vmem:[%s1 + $0x40] sm:$0xf]
    %v50 = vld [vmem:[%s1 + $0x44] sm:$0xf]
    %v51 = vld [vmem:[%s1 + $0x48] sm:$0xf]
    %v52 = vld [vmem:[%s1 + $0x4c] sm:$0xf]
    %v53 = vld [vmem:[%s1 + $0x50] sm:$0xf]
    %v54 = vld [vmem:[%s1 + $0x54] sm:$0xf]
    %v55 = vld [vmem:[%s1 + $0x58] sm:$0xf]
    %v56 = vld [vmem:[%s1 + $0x5c] sm:$0xf]
    %v57 = vld [vmem:[%s1 + $0x60] sm:$0xf]
    %v58 = vld [vmem:[%s1 + $0x64] sm:$0xf]
    %v59 = vld [vmem:[%s1 + $0x68] sm:$0xf]
    %v60 = vld [vmem:[%s1 + $0x6c] sm:$0xf]
    %v61 = vld [vmem:[%s1 + $0x70] sm:$0xf]
    %v62 = vld [vmem:[%s1 + $0x74] sm:$0xf]
    %v63 = vld [vmem:[%s1 + $0x78] sm:$0xf]
    %v64 = vld [vmem:[%s1 + $0x7c] sm:$0xf]
    %v65 = vld [vmem:[%s3] sm:$0xf]
    %v66 = vld [vmem:[%s3 + $0x4] sm:$0xf]
    %v67 = vld [vmem:[%s3 + $0x8] sm:$0xf]
    %v68 = vld [vmem:[%s3 + $0xc] sm:$0xf]
    %v69 = vld [vmem:[%s3 + $0x10] sm:$0xf]
    %v70 = vld [vmem:[%s3 + $0x14] sm:$0xf]
    %v71 = vld [vmem:[%s3 + $0x18] sm:$0xf]
    %v72 = vld [vmem:[%s3 + $0x1c] sm:$0xf]
    %v73 = vld [vmem:[%s3 + $0x20] sm:$0xf]
    %v74 = vld [vmem:[%s3 + $0x24] sm:$0xf]
    %v75 = vld [vmem:[%s3 + $0x28] sm:$0xf]
    %v76 = vld [vmem:[%s3 + $0x2c] sm:$0xf]
    %v77 = vld [vmem:[%s3 + $0x30] sm:$0xf]
    %v78 = vld [vmem:[%s3 + $0x34] sm:$0xf]
    %v79 = vld [vmem:[%s3 + $0x38] sm:$0xf]
    %v80 = vld [vmem:[%s3 + $0x3c] sm:$0xf]
    %v81 = vld [vmem:[%s4] sm:$0x3]
    %v82 = vld [vmem:[%s5] sm:$0x3]
    %v83 = vld [vmem:[%s6] sm:$0xf]
    %v84 = vld [vmem:[%s0] sm:$0xf]
    %v87 = vunpack.c.l.s4 1983009808
    %v88 = vunpack.c.0.s8 %v87
    %v89 = vlaneseq
    %v90 = vshrl.u32 %v89, 7
    %v91 = vsub.s32 %v88, %v90
    %v92 = vrot.slane %v84, %v91
    %v93 = vcombine.high %v92, %v92
    %v128 = vunpack.c.l.b16 %v33
    %v129 = vunpack.c.l.b16 %v34
    %v130 = vunpack.c.l.b16 %v35
    %v131 = vunpack.c.l.b16 %v36
    %v132 = vunpack.c.l.b16 %v37
    %v133 = vunpack.c.l.b16 %v38
    %v134 = vunpack.c.l.b16 %v39
    %v135 = vunpack.c.l.b16 %v40
    %v136 = vunpack.c.l.b16 %v41
    %v137 = vunpack.c.l.b16 %v42
    %v138 = vunpack.c.l.b16 %v43
    %v139 = vunpack.c.l.b16 %v44
    %v140 = vunpack.c.l.b16 %v45
    %v141 = vunpack.c.l.b16 %v46
    %v142 = vunpack.c.l.b16 %v47
    %v143 = vunpack.c.l.b16 %v48
    %v144 = vunpack.c.l.b16 %v49
    %v145 = vunpack.c.l.b16 %v50
    %v146 = vunpack.c.l.b16 %v51
    %v147 = vunpack.c.l.b16 %v52
    %v148 = vunpack.c.l.b16 %v53
    %v149 = vunpack.c.l.b16 %v54
    %v150 = vunpack.c.l.b16 %v55
    %v151 = vunpack.c.l.b16 %v56
    %v152 = vunpack.c.l.b16 %v57
    %v153 = vunpack.c.l.b16 %v58
    %v154 = vunpack.c.l.b16 %v59
    %v155 = vunpack.c.l.b16 %v60
    %v156 = vunpack.c.l.b16 %v61
    %v157 = vunpack.c.l.b16 %v62
    %v158 = vunpack.c.l.b16 %v63
    %v159 = vunpack.c.l.b16 %v64
    %v160 = vpack.c.b16 %v129, %v128
    %v161 = vpack.c.b16 %v131, %v130
    %v162 = vpack.c.b16 %v133, %v132
    %v163 = vpack.c.b16 %v135, %v134
    %v164 = vpack.c.b16 %v137, %v136
    %v165 = vpack.c.b16 %v139, %v138
    %v166 = vpack.c.b16 %v141, %v140
    %v167 = vpack.c.b16 %v143, %v142
    %v168 = vpack.c.b16 %v145, %v144
    %v169 = vpack.c.b16 %v147, %v146
    %v170 = vpack.c.b16 %v149, %v148
    %v171 = vpack.c.b16 %v151, %v150
    %v172 = vpack.c.b16 %v153, %v152
    %v173 = vpack.c.b16 %v155, %v154
    %v174 = vpack.c.b16 %v157, %v156
    %v175 = vpack.c.b16 %v159, %v158
    %192 = vmatprep.subr.bf16.mxu0 0
    %193 = vmatpush1.bf16.msra.mxu0 %v160
    %194 = vmatprep.subr.bf16.mxu0 0
    %195 = vmatpush1.bf16.msra.mxu0 %v161
    %196 = vmatprep.subr.bf16.mxu0 0
    %197 = vmatpush1.bf16.msra.mxu0 %v162
    %198 = vmatprep.subr.bf16.mxu0 0
    %199 = vmatpush1.bf16.msra.mxu0 %v163
    %200 = vmatprep.subr.bf16.mxu0 0
    %201 = vmatpush1.bf16.msra.mxu0 %v164
    %202 = vmatprep.subr.bf16.mxu0 0
    %203 = vmatpush1.bf16.msra.mxu0 %v165
    %204 = vmatprep.subr.bf16.mxu0 0
    %205 = vmatpush1.bf16.msra.mxu0 %v166
    %206 = vmatprep.subr.bf16.mxu0 0
    %207 = vmatpush1.bf16.msra.mxu0 %v167
    %208 = vmatprep.subr.bf16.mxu0 0
    %209 = vmatpush1.bf16.msra.mxu0 %v168
    %210 = vmatprep.subr.bf16.mxu0 0
    %211 = vmatpush1.bf16.msra.mxu0 %v169
    %212 = vmatprep.subr.bf16.mxu0 0
    %213 = vmatpush1.bf16.msra.mxu0 %v170
    %214 = vmatprep.subr.bf16.mxu0 0
    %215 = vmatpush1.bf16.msra.mxu0 %v171
    %216 = vmatprep.subr.bf16.mxu0 0
    %217 = vmatpush1.bf16.msra.mxu0 %v172
    %218 = vmatprep.subr.bf16.mxu0 0
    %219 = vmatpush1.bf16.msra.mxu0 %v173
    %220 = vmatprep.subr.bf16.mxu0 0
    %221 = vmatpush1.bf16.msra.mxu0 %v174
    %222 = vmatprep.subr.bf16.mxu0 0
    %223 = vmatpush1.bf16.msra.mxu0 %v175
    %224 = vmatprep.mubr.bf16.mxu0 %v93
    %225 = vmatmul.mubr.bf16.gmra.mrb[0].mxu0 %v92
    %v226 = vpop.f32.mrb[0].mxu0
    %v227 = vadd.f32 0.0, %v226
    %v228 = vpop.f32.mrb[0].mxu0
    %v229 = vpop.f32.mrb[0].mxu0
    %v230 = vpop.f32.mrb[0].mxu0
    %231 = vdwg.mxu0
    %v232 = vpack.c.bf16 %v227, %v227
    %v233 = vld [vmem:[%s2] sm:$0x3]
    %v235 = vcombine.low %v233, %v233
    %v237 = vunpack.c.l.s4 1983009808
    %v238 = vunpack.c.0.s8 %v237
    %v239 = vlaneseq
    %v240 = vshrl.u32 %v239, 7
    %v241 = vsub.s32 %v238, %v240
    %v242 = vrot.slane %v235, %v241
    %vm243 = vcmask 1041408
    %v246 = vsel %vm243, %v232, %v242
    %v264 = vunpack.c.l.b16 %v65
    %v265 = vunpack.c.l.b16 %v66
    %v266 = vunpack.c.l.b16 %v67
    %v267 = vunpack.c.l.b16 %v68
    %v268 = vunpack.c.l.b16 %v69
    %v269 = vunpack.c.l.b16 %v70
    %v270 = vunpack.c.l.b16 %v71
    %v271 = vunpack.c.l.b16 %v72
    %v272 = vunpack.c.l.b16 %v73
    %v273 = vunpack.c.l.b16 %v74
    %v274 = vunpack.c.l.b16 %v75
    %v275 = vunpack.c.l.b16 %v76
    %v276 = vunpack.c.l.b16 %v77
    %v277 = vunpack.c.l.b16 %v78
    %v278 = vunpack.c.l.b16 %v79
    %v279 = vunpack.c.l.b16 %v80
    %v280 = vpack.c.b16 %v265, %v264
    %v281 = vpack.c.b16 %v267, %v266
    %v282 = vpack.c.b16 %v269, %v268
    %v283 = vpack.c.b16 %v271, %v270
    %v284 = vpack.c.b16 %v273, %v272
    %v285 = vpack.c.b16 %v275, %v274
    %v286 = vpack.c.b16 %v277, %v276
    %v287 = vpack.c.b16 %v279, %v278
    %296 = vmatprep.subr.bf16.mxu0 0
    %297 = vmatpush1.bf16.msra.mxu0 %v280
    %298 = vmatprep.subr.bf16.mxu0 0
    %299 = vmatpush1.bf16.msra.mxu0 %v281
    %300 = vmatprep.subr.bf16.mxu0 0
    %301 = vmatpush1.bf16.msra.mxu0 %v282
    %302 = vmatprep.subr.bf16.mxu0 0
    %303 = vmatpush1.bf16.msra.mxu0 %v283
    %304 = vmatprep.subr.bf16.mxu0 0
    %305 = vmatpush1.bf16.msra.mxu0 %v284
    %306 = vmatprep.subr.bf16.mxu0 0
    %307 = vmatpush1.bf16.msra.mxu0 %v285
    %308 = vmatprep.subr.bf16.mxu0 0
    %309 = vmatpush1.bf16.msra.mxu0 %v286
    %310 = vmatprep.subr.bf16.mxu0 0
    %311 = vmatpush1.bf16.msra.mxu0 %v287
    %312 = vmatprep.subr.bf16.mxu0 0
    %313 = vmatpush1.bf16.msra.mxu0 0
    %314 = vmatprep.subr.bf16.mxu0 0
    %315 = vmatpush1.bf16.msra.mxu0 0
    %316 = vmatprep.subr.bf16.mxu0 0
    %317 = vmatpush1.bf16.msra.mxu0 0
    %318 = vmatprep.subr.bf16.mxu0 0
    %319 = vmatpush1.bf16.msra.mxu0 0
    %320 = vmatprep.subr.bf16.mxu0 0
    %321 = vmatpush1.bf16.msra.mxu0 0
    %322 = vmatprep.subr.bf16.mxu0 0
    %323 = vmatpush1.bf16.msra.mxu0 0
    %324 = vmatprep.subr.bf16.mxu0 0
    %325 = vmatpush1.bf16.msra.mxu0 0
    %326 = vmatprep.subr.bf16.mxu0 0
    %327 = vmatpush1.bf16.msra.mxu0 0
    %328 = vmatprep.mubr.bf16.mxu0 0
    %329 = vmatmul.mubr.bf16.gmra.mrb[0].mxu0 %v246
    %v330 = vpop.f32.mrb[0].mxu0
    %v331 = vadd.f32 0.0, %v330
    %v332 = vpop.f32.mrb[0].mxu0
    %v333 = vpop.f32.mrb[0].mxu0
    %v334 = vpop.f32.mrb[0].mxu0
    %335 = vdwg.mxu0
    %v336 = vpack.c.bf16 %v331, %v331
    %337 = vmatprep.subr.bf16.mxu0 0
    %338 = vmatpush1.bf16.msra.mxu0 %v280
    %339 = vmatprep.subr.bf16.mxu0 0
    %340 = vmatpush1.bf16.msra.mxu0 %v281
    %341 = vmatprep.subr.bf16.mxu0 0
    %342 = vmatpush1.bf16.msra.mxu0 %v282
    %343 = vmatprep.subr.bf16.mxu0 0
    %344 = vmatpush1.bf16.msra.mxu0 %v283
    %345 = vmatprep.subr.bf16.mxu0 0
    %346 = vmatpush1.bf16.msra.mxu0 %v284
    %347 = vmatprep.subr.bf16.mxu0 0
    %348 = vmatpush1.bf16.msra.mxu0 %v285
    %349 = vmatprep.subr.bf16.mxu0 0
    %350 = vmatpush1.bf16.msra.mxu0 %v286
    %351 = vmatprep.subr.bf16.mxu0 0
    %352 = vmatpush1.bf16.msra.mxu0 %v287
    %353 = vmatprep.subr.bf16.mxu0 0
    %354 = vmatpush1.bf16.msra.mxu0 0
    %355 = vmatprep.subr.bf16.mxu0 0
    %356 = vmatpush1.bf16.msra.mxu0 0
    %357 = vmatprep.subr.bf16.mxu0 0
    %358 = vmatpush1.bf16.msra.mxu0 0
    %359 = vmatprep.subr.bf16.mxu0 0
    %360 = vmatpush1.bf16.msra.mxu0 0
    %361 = vmatprep.subr.bf16.mxu0 0
    %362 = vmatpush1.bf16.msra.mxu0 0
    %363 = vmatprep.subr.bf16.mxu0 0
    %364 = vmatpush1.bf16.msra.mxu0 0
    %365 = vmatprep.subr.bf16.mxu0 0
    %366 = vmatpush1.bf16.msra.mxu0 0
    %367 = vmatprep.subr.bf16.mxu0 0
    %368 = vmatpush1.bf16.msra.mxu0 0
    %369 = vmatprep.mubr.bf16.mxu0 0
    %370 = vmatmul.mubr.bf16.gmra.mrb[0].mxu0 %v336
    %v371 = vpop.f32.mrb[0].mxu0
    %v372 = vadd.f32 0.0, %v371
    %v373 = vpop.f32.mrb[0].mxu0
    %v374 = vpop.f32.mrb[0].mxu0
    %v375 = vpop.f32.mrb[0].mxu0
    %376 = vdwg.mxu0
    %v377 = vmul.f32 %v372, 2.0
    %v378 = vunpack.c.l.bf16 %v246
    %v379 = vsub.f32 %v377, %v378
    %v380 = vpack.c.bf16 %v379, %v379
    %v382 = vrot.slane %v336, 4
    %vm383 = vcmask 1043456
    %v385 = vsel %vm383, %v246, %v382
    %388 = vset.pattern.permute.xlu0 0
    %389 = vperm.xlu0 %388, %v83
    %v390 = vpop.permute.xlu0 %389
    %vm392 = vcmask 195584
    %v394 = vsel %vm392, %v81, 0
    %v397 = vsel %vm383, %v380, 0
    %399 = vmatprep.subr.bf16.mxu0 0
    %400 = vmatpush1.bf16.msra.mxu0 %v385
    %401 = vmatprep.subr.bf16.mxu0 0
    %402 = vmatpush1.bf16.msra.mxu0 %v397
    %403 = vmatprep.subr.bf16.mxu0 0
    %404 = vmatpush1.bf16.msra.mxu0 0
    %405 = vmatprep.subr.bf16.mxu0 0
    %406 = vmatpush1.bf16.msra.mxu0 0
    %407 = vmatprep.subr.bf16.mxu0 0
    %408 = vmatpush1.bf16.msra.mxu0 0
    %409 = vmatprep.subr.bf16.mxu0 0
    %410 = vmatpush1.bf16.msra.mxu0 0
    %411 = vmatprep.subr.bf16.mxu0 0
    %412 = vmatpush1.bf16.msra.mxu0 0
    %413 = vmatprep.subr.bf16.mxu0 0
    %414 = vmatpush1.bf16.msra.mxu0 0
    %415 = vmatprep.subr.bf16.mxu0 0
    %416 = vmatpush1.bf16.msra.mxu0 0
    %417 = vmatprep.subr.bf16.mxu0 0
    %418 = vmatpush1.bf16.msra.mxu0 0
    %419 = vmatprep.subr.bf16.mxu0 0
    %420 = vmatpush1.bf16.msra.mxu0 0
    %421 = vmatprep.subr.bf16.mxu0 0
    %422 = vmatpush1.bf16.msra.mxu0 0
    %423 = vmatprep.subr.bf16.mxu0 0
    %424 = vmatpush1.bf16.msra.mxu0 0
    %425 = vmatprep.subr.bf16.mxu0 0
    %426 = vmatpush1.bf16.msra.mxu0 0
    %427 = vmatprep.subr.bf16.mxu0 0
    %428 = vmatpush1.bf16.msra.mxu0 0
    %429 = vmatprep.subr.bf16.mxu0 0
    %430 = vmatpush1.bf16.msra.mxu0 0
    %431 = vmatprep.mubr.bf16.mxu0 0
    %432 = vmatmul.mubr.bf16.gmra.mrb[0].mxu0 %v394
    %v433 = vpop.f32.mrb[0].mxu0
    %v434 = vadd.f32 %v390, %v433
    %v435 = vpop.f32.mrb[0].mxu0
    %v436 = vpop.f32.mrb[0].mxu0
    %v437 = vpop.f32.mrb[0].mxu0
    %438 = vdwg.mxu0
    %v439 = vmax.f32 %v434, 0.0
    %s440 = scalar_lea.vmem %s0, 4
    %v441 = vld [vmem:[%s440] sm:$0xf]
    %v444 = vunpack.c.l.s4 1983009808
    %v445 = vunpack.c.0.s8 %v444
    %v446 = vlaneseq
    %v447 = vshrl.u32 %v446, 7
    %v448 = vsub.s32 %v445, %v447
    %v449 = vrot.slane %v441, %v448
    %v450 = vcombine.high %v449, %v449
    %453 = vmatprep.subr.bf16.mxu0 0
    %454 = vmatpush1.bf16.msra.mxu0 %v160
    %455 = vmatprep.subr.bf16.mxu0 0
    %456 = vmatpush1.bf16.msra.mxu0 %v161
    %457 = vmatprep.subr.bf16.mxu0 0
    %458 = vmatpush1.bf16.msra.mxu0 %v162
    %459 = vmatprep.subr.bf16.mxu0 0
    %460 = vmatpush1.bf16.msra.mxu0 %v163
    %461 = vmatprep.subr.bf16.mxu0 0
    %462 = vmatpush1.bf16.msra.mxu0 %v164
    %463 = vmatprep.subr.bf16.mxu0 0
    %464 = vmatpush1.bf16.msra.mxu0 %v165
    %465 = vmatprep.subr.bf16.mxu0 0
    %466 = vmatpush1.bf16.msra.mxu0 %v166
    %467 = vmatprep.subr.bf16.mxu0 0
    %468 = vmatpush1.bf16.msra.mxu0 %v167
    %469 = vmatprep.subr.bf16.mxu0 0
    %470 = vmatpush1.bf16.msra.mxu0 %v168
    %471 = vmatprep.subr.bf16.mxu0 0
    %472 = vmatpush1.bf16.msra.mxu0 %v169
    %473 = vmatprep.subr.bf16.mxu0 0
    %474 = vmatpush1.bf16.msra.mxu0 %v170
    %475 = vmatprep.subr.bf16.mxu0 0
    %476 = vmatpush1.bf16.msra.mxu0 %v171
    %477 = vmatprep.subr.bf16.mxu0 0
    %478 = vmatpush1.bf16.msra.mxu0 %v172
    %479 = vmatprep.subr.bf16.mxu0 0
    %480 = vmatpush1.bf16.msra.mxu0 %v173
    %481 = vmatprep.subr.bf16.mxu0 0
    %482 = vmatpush1.bf16.msra.mxu0 %v174
    %483 = vmatprep.subr.bf16.mxu0 0
    %484 = vmatpush1.bf16.msra.mxu0 %v175
    %485 = vmatprep.mubr.bf16.mxu0 %v450
    %486 = vmatmul.mubr.bf16.gmra.mrb[0].mxu0 %v449
    %v487 = vpop.f32.mrb[0].mxu0
    %v488 = vadd.f32 0.0, %v487
    %v489 = vpop.f32.mrb[0].mxu0
    %v490 = vpop.f32.mrb[0].mxu0
    %v491 = vpop.f32.mrb[0].mxu0
    %492 = vdwg.mxu0
    %v493 = vpack.c.bf16 %v488, %v488
    %s494 = scalar_lea.vmem %s2, 2
    %v495 = vld [vmem:[%s494] sm:$0x3]
    %v497 = vcombine.low %v495, %v495
    %v499 = vunpack.c.l.s4 1983009808
    %v500 = vunpack.c.0.s8 %v499
    %v501 = vlaneseq
    %v502 = vshrl.u32 %v501, 7
    %v503 = vsub.s32 %v500, %v502
    %v504 = vrot.slane %v497, %v503
    %v507 = vsel %vm243, %v493, %v504
    %509 = vmatprep.subr.bf16.mxu0 0
    %510 = vmatpush1.bf16.msra.mxu0 %v280
    %511 = vmatprep.subr.bf16.mxu0 0
    %512 = vmatpush1.bf16.msra.mxu0 %v281
    %513 = vmatprep.subr.bf16.mxu0 0
    %514 = vmatpush1.bf16.msra.mxu0 %v282
    %515 = vmatprep.subr.bf16.mxu0 0
    %516 = vmatpush1.bf16.msra.mxu0 %v283
    %517 = vmatprep.subr.bf16.mxu0 0
    %518 = vmatpush1.bf16.msra.mxu0 %v284
    %519 = vmatprep.subr.bf16.mxu0 0
    %520 = vmatpush1.bf16.msra.mxu0 %v285
    %521 = vmatprep.subr.bf16.mxu0 0
    %522 = vmatpush1.bf16.msra.mxu0 %v286
    %523 = vmatprep.subr.bf16.mxu0 0
    %524 = vmatpush1.bf16.msra.mxu0 %v287
    %525 = vmatprep.subr.bf16.mxu0 0
    %526 = vmatpush1.bf16.msra.mxu0 0
    %527 = vmatprep.subr.bf16.mxu0 0
    %528 = vmatpush1.bf16.msra.mxu0 0
    %529 = vmatprep.subr.bf16.mxu0 0
    %530 = vmatpush1.bf16.msra.mxu0 0
    %531 = vmatprep.subr.bf16.mxu0 0
    %532 = vmatpush1.bf16.msra.mxu0 0
    %533 = vmatprep.subr.bf16.mxu0 0
    %534 = vmatpush1.bf16.msra.mxu0 0
    %535 = vmatprep.subr.bf16.mxu0 0
    %536 = vmatpush1.bf16.msra.mxu0 0
    %537 = vmatprep.subr.bf16.mxu0 0
    %538 = vmatpush1.bf16.msra.mxu0 0
    %539 = vmatprep.subr.bf16.mxu0 0
    %540 = vmatpush1.bf16.msra.mxu0 0
    %541 = vmatprep.mubr.bf16.mxu0 0
    %542 = vmatmul.mubr.bf16.gmra.mrb[0].mxu0 %v507
    %v543 = vpop.f32.mrb[0].mxu0
    %v544 = vadd.f32 0.0, %v543
    %v545 = vpop.f32.mrb[0].mxu0
    %v546 = vpop.f32.mrb[0].mxu0
    %v547 = vpop.f32.mrb[0].mxu0
    %548 = vdwg.mxu0
    %v549 = vpack.c.bf16 %v544, %v544
    %550 = vmatprep.subr.bf16.mxu0 0
    %551 = vmatpush1.bf16.msra.mxu0 %v280
    %552 = vmatprep.subr.bf16.mxu0 0
    %553 = vmatpush1.bf16.msra.mxu0 %v281
    %554 = vmatprep.subr.bf16.mxu0 0
    %555 = vmatpush1.bf16.msra.mxu0 %v282
    %556 = vmatprep.subr.bf16.mxu0 0
    %557 = vmatpush1.bf16.msra.mxu0 %v283
    %558 = vmatprep.subr.bf16.mxu0 0
    %559 = vmatpush1.bf16.msra.mxu0 %v284
    %560 = vmatprep.subr.bf16.mxu0 0
    %561 = vmatpush1.bf16.msra.mxu0 %v285
    %562 = vmatprep.subr.bf16.mxu0 0
    %563 = vmatpush1.bf16.msra.mxu0 %v286
    %564 = vmatprep.subr.bf16.mxu0 0
    %565 = vmatpush1.bf16.msra.mxu0 %v287
    %566 = vmatprep.subr.bf16.mxu0 0
    %567 = vmatpush1.bf16.msra.mxu0 0
    %568 = vmatprep.subr.bf16.mxu0 0
    %569 = vmatpush1.bf16.msra.mxu0 0
    %570 = vmatprep.subr.bf16.mxu0 0
    %571 = vmatpush1.bf16.msra.mxu0 0
    %572 = vmatprep.subr.bf16.mxu0 0
    %573 = vmatpush1.bf16.msra.mxu0 0
    %574 = vmatprep.subr.bf16.mxu0 0
    %575 = vmatpush1.bf16.msra.mxu0 0
    %576 = vmatprep.subr.bf16.mxu0 0
    %577 = vmatpush1.bf16.msra.mxu0 0
    %578 = vmatprep.subr.bf16.mxu0 0
    %579 = vmatpush1.bf16.msra.mxu0 0
    %580 = vmatprep.subr.bf16.mxu0 0
    %581 = vmatpush1.bf16.msra.mxu0 0
    %582 = vmatprep.mubr.bf16.mxu0 0
    %583 = vmatmul.mubr.bf16.gmra.mrb[0].mxu0 %v549
    %v584 = vpop.f32.mrb[0].mxu0
    %v585 = vadd.f32 0.0, %v584
    %v586 = vpop.f32.mrb[0].mxu0
    %v587 = vpop.f32.mrb[0].mxu0
    %v588 = vpop.f32.mrb[0].mxu0
    %589 = vdwg.mxu0
    %v590 = vmul.f32 %v585, 2.0
    %v591 = vunpack.c.l.bf16 %v507
    %v592 = vsub.f32 %v590, %v591
    %v593 = vpack.c.bf16 %v592, %v592
    %v595 = vrot.slane %v549, 4
    %v597 = vsel %vm383, %v507, %v595
    %v600 = vsel %vm383, %v593, 0
    %602 = vmatprep.subr.bf16.mxu0 0
    %603 = vmatpush1.bf16.msra.mxu0 %v597
    %604 = vmatprep.subr.bf16.mxu0 0
    %605 = vmatpush1.bf16.msra.mxu0 %v600
    %606 = vmatprep.subr.bf16.mxu0 0
    %607 = vmatpush1.bf16.msra.mxu0 0
    %608 = vmatprep.subr.bf16.mxu0 0
    %609 = vmatpush1.bf16.msra.mxu0 0
    %610 = vmatprep.subr.bf16.mxu0 0
    %611 = vmatpush1.bf16.msra.mxu0 0
    %612 = vmatprep.subr.bf16.mxu0 0
    %613 = vmatpush1.bf16.msra.mxu0 0
    %614 = vmatprep.subr.bf16.mxu0 0
    %615 = vmatpush1.bf16.msra.mxu0 0
    %616 = vmatprep.subr.bf16.mxu0 0
    %617 = vmatpush1.bf16.msra.mxu0 0
    %618 = vmatprep.subr.bf16.mxu0 0
    %619 = vmatpush1.bf16.msra.mxu0 0
    %620 = vmatprep.subr.bf16.mxu0 0
    %621 = vmatpush1.bf16.msra.mxu0 0
    %622 = vmatprep.subr.bf16.mxu0 0
    %623 = vmatpush1.bf16.msra.mxu0 0
    %624 = vmatprep.subr.bf16.mxu0 0
    %625 = vmatpush1.bf16.msra.mxu0 0
    %626 = vmatprep.subr.bf16.mxu0 0
    %627 = vmatpush1.bf16.msra.mxu0 0
    %628 = vmatprep.subr.bf16.mxu0 0
    %629 = vmatpush1.bf16.msra.mxu0 0
    %630 = vmatprep.subr.bf16.mxu0 0
    %631 = vmatpush1.bf16.msra.mxu0 0
    %632 = vmatprep.subr.bf16.mxu0 0
    %633 = vmatpush1.bf16.msra.mxu0 0
    %634 = vmatprep.mubr.bf16.mxu0 0
    %635 = vmatmul.mubr.bf16.gmra.mrb[0].mxu0 %v394
    %v636 = vpop.f32.mrb[0].mxu0
    %v637 = vadd.f32 %v390, %v636
    %v638 = vpop.f32.mrb[0].mxu0
    %v639 = vpop.f32.mrb[0].mxu0
    %v640 = vpop.f32.mrb[0].mxu0
    %641 = vdwg.mxu0
    %v642 = vmax.f32 %v637, 0.0
    %v643 = vmul.f32 %v439, %v32
    %v644 = vsel %vm383, %v643, 0.0
    %645 = vadd.xlane.f32.xlu0 %v644
    %v646 = vpop.xlane.xlu0 %645
    %v647 = vadd.f32 %v646, 0.0
    %v648 = vmul.f32 %v642, %v32
    %v649 = vsel %vm383, %v648, 0.0
    %650 = vadd.xlane.f32.xlu0 %v649
    %v651 = vpop.xlane.xlu0 %650
    %v652 = vadd.f32 %v647, %v651
    %v653 = vmul.f32 %v652, 0.0625
    %v654 = vsub.f32 %v439, %v653
    %v655 = vmul.f32 %v654, %v32
    %v656 = vmul.f32 %v655, %v655
    %v657 = vsel %vm383, %v656, 0.0
    %658 = vadd.xlane.f32.xlu0 %v657
    %v659 = vpop.xlane.xlu0 %658
    %v660 = vadd.f32 %v659, 0.0
    %v661 = vsub.f32 %v642, %v653
    %v662 = vmul.f32 %v661, %v32
    %v663 = vmul.f32 %v662, %v662
    %v664 = vsel %vm383, %v663, 0.0
    %665 = vadd.xlane.f32.xlu0 %v664
    %v666 = vpop.xlane.xlu0 %665
    %v667 = vadd.f32 %v660, %v666
    %v668 = vmul.f32 %v667, 0.0625
    %v669 = vadd.f32 %v668, 1e-05
    %v670 = vrsqrt.pop %v669
    %v671 = vmul.f32 %v654, %v670
    %672 = vset.pattern.permute.xlu0 1
    %673 = vperm.xlu0 %672, %v83
    %v674 = vpop.permute.xlu0 %673
    %v676 = vmul.f32 %v671, %v674
    %677 = vset.pattern.permute.xlu0 2
    %678 = vperm.xlu0 %677, %v83
    %v679 = vpop.permute.xlu0 %678
    %v681 = vadd.f32 %v676, %v679
    %v682 = vmul.f32 %v681, %v32
    %v683 = vmul.f32 %v661, %v670
    %v684 = vmul.f32 %v683, %v674
    %v685 = vadd.f32 %v684, %v679
    %v686 = vmul.f32 %v685, %v32
    %v687 = vpack.c.bf16 %v682, %v682
    %688 = vmatprep.subr.bf16.mxu0 0
    %689 = vmatpush1.bf16.msra.mxu0 %v280
    %690 = vmatprep.subr.bf16.mxu0 0
    %691 = vmatpush1.bf16.msra.mxu0 %v281
    %692 = vmatprep.subr.bf16.mxu0 0
    %693 = vmatpush1.bf16.msra.mxu0 %v282
    %694 = vmatprep.subr.bf16.mxu0 0
    %695 = vmatpush1.bf16.msra.mxu0 %v283
    %696 = vmatprep.subr.bf16.mxu0 0
    %697 = vmatpush1.bf16.msra.mxu0 %v284
    %698 = vmatprep.subr.bf16.mxu0 0
    %699 = vmatpush1.bf16.msra.mxu0 %v285
    %700 = vmatprep.subr.bf16.mxu0 0
    %701 = vmatpush1.bf16.msra.mxu0 %v286
    %702 = vmatprep.subr.bf16.mxu0 0
    %703 = vmatpush1.bf16.msra.mxu0 %v287
    %704 = vmatprep.subr.bf16.mxu0 0
    %705 = vmatpush1.bf16.msra.mxu0 0
    %706 = vmatprep.subr.bf16.mxu0 0
    %707 = vmatpush1.bf16.msra.mxu0 0
    %708 = vmatprep.subr.bf16.mxu0 0
    %709 = vmatpush1.bf16.msra.mxu0 0
    %710 = vmatprep.subr.bf16.mxu0 0
    %711 = vmatpush1.bf16.msra.mxu0 0
    %712 = vmatprep.subr.bf16.mxu0 0
    %713 = vmatpush1.bf16.msra.mxu0 0
    %714 = vmatprep.subr.bf16.mxu0 0
    %715 = vmatpush1.bf16.msra.mxu0 0
    %716 = vmatprep.subr.bf16.mxu0 0
    %717 = vmatpush1.bf16.msra.mxu0 0
    %718 = vmatprep.subr.bf16.mxu0 0
    %719 = vmatpush1.bf16.msra.mxu0 0
    %720 = vmatprep.mubr.bf16.mxu0 0
    %721 = vmatmul.mubr.bf16.gmra.mrb[0].mxu0 %v687
    %v722 = vpop.f32.mrb[0].mxu0
    %v723 = vadd.f32 0.0, %v722
    %v724 = vpop.f32.mrb[0].mxu0
    %v725 = vpop.f32.mrb[0].mxu0
    %v726 = vpop.f32.mrb[0].mxu0
    %727 = vdwg.mxu0
    %v728 = vpack.c.bf16 %v723, %v723
    %729 = vmatprep.subr.bf16.mxu0 0
    %730 = vmatpush1.bf16.msra.mxu0 %v280
    %731 = vmatprep.subr.bf16.mxu0 0
    %732 = vmatpush1.bf16.msra.mxu0 %v281
    %733 = vmatprep.subr.bf16.mxu0 0
    %734 = vmatpush1.bf16.msra.mxu0 %v282
    %735 = vmatprep.subr.bf16.mxu0 0
    %736 = vmatpush1.bf16.msra.mxu0 %v283
    %737 = vmatprep.subr.bf16.mxu0 0
    %738 = vmatpush1.bf16.msra.mxu0 %v284
    %739 = vmatprep.subr.bf16.mxu0 0
    %740 = vmatpush1.bf16.msra.mxu0 %v285
    %741 = vmatprep.subr.bf16.mxu0 0
    %742 = vmatpush1.bf16.msra.mxu0 %v286
    %743 = vmatprep.subr.bf16.mxu0 0
    %744 = vmatpush1.bf16.msra.mxu0 %v287
    %745 = vmatprep.subr.bf16.mxu0 0
    %746 = vmatpush1.bf16.msra.mxu0 0
    %747 = vmatprep.subr.bf16.mxu0 0
    %748 = vmatpush1.bf16.msra.mxu0 0
    %749 = vmatprep.subr.bf16.mxu0 0
    %750 = vmatpush1.bf16.msra.mxu0 0
    %751 = vmatprep.subr.bf16.mxu0 0
    %752 = vmatpush1.bf16.msra.mxu0 0
    %753 = vmatprep.subr.bf16.mxu0 0
    %754 = vmatpush1.bf16.msra.mxu0 0
    %755 = vmatprep.subr.bf16.mxu0 0
    %756 = vmatpush1.bf16.msra.mxu0 0
    %757 = vmatprep.subr.bf16.mxu0 0
    %758 = vmatpush1.bf16.msra.mxu0 0
    %759 = vmatprep.subr.bf16.mxu0 0
    %760 = vmatpush1.bf16.msra.mxu0 0
    %761 = vmatprep.mubr.bf16.mxu0 0
    %762 = vmatmul.mubr.bf16.gmra.mrb[0].mxu0 %v728
    %v763 = vpop.f32.mrb[0].mxu0
    %v764 = vadd.f32 0.0, %v763
    %v765 = vpop.f32.mrb[0].mxu0
    %v766 = vpop.f32.mrb[0].mxu0
    %v767 = vpop.f32.mrb[0].mxu0
    %768 = vdwg.mxu0
    %v769 = vmul.f32 %v764, 2.0
    %v770 = vunpack.c.l.bf16 %v687
    %v771 = vsub.f32 %v769, %v770
    %v772 = vpack.c.bf16 %v771, %v771
    %v774 = vrot.slane %v728, 6
    %v776 = vrot.slane %v772, 4
    %v779 = vsel %vm243, %v687, %v774
    %v781 = vsel %vm383, %v779, %v776
    %782 = vset.pattern.permute.xlu0 3
    %783 = vperm.xlu0 %782, %v83
    %v784 = vpop.permute.xlu0 %783
    %vm786 = vcmask 97280
    %v788 = vsel %vm786, %v82, 0
    %vm790 = vcmask 1045504
    %v791 = vsel %vm790, %v781, 0
    %793 = vmatprep.subr.bf16.mxu0 0
    %794 = vmatpush1.bf16.msra.mxu0 %v791
    %795 = vmatprep.subr.bf16.mxu0 0
    %796 = vmatpush1.bf16.msra.mxu0 0
    %797 = vmatprep.subr.bf16.mxu0 0
    %798 = vmatpush1.bf16.msra.mxu0 0
    %799 = vmatprep.subr.bf16.mxu0 0
    %800 = vmatpush1.bf16.msra.mxu0 0
    %801 = vmatprep.subr.bf16.mxu0 0
    %802 = vmatpush1.bf16.msra.mxu0 0
    %803 = vmatprep.subr.bf16.mxu0 0
    %804 = vmatpush1.bf16.msra.mxu0 0
    %805 = vmatprep.subr.bf16.mxu0 0
    %806 = vmatpush1.bf16.msra.mxu0 0
    %807 = vmatprep.subr.bf16.mxu0 0
    %808 = vmatpush1.bf16.msra.mxu0 0
    %809 = vmatprep.subr.bf16.mxu0 0
    %810 = vmatpush1.bf16.msra.mxu0 0
    %811 = vmatprep.subr.bf16.mxu0 0
    %812 = vmatpush1.bf16.msra.mxu0 0
    %813 = vmatprep.subr.bf16.mxu0 0
    %814 = vmatpush1.bf16.msra.mxu0 0
    %815 = vmatprep.subr.bf16.mxu0 0
    %816 = vmatpush1.bf16.msra.mxu0 0
    %817 = vmatprep.subr.bf16.mxu0 0
    %818 = vmatpush1.bf16.msra.mxu0 0
    %819 = vmatprep.subr.bf16.mxu0 0
    %820 = vmatpush1.bf16.msra.mxu0 0
    %821 = vmatprep.subr.bf16.mxu0 0
    %822 = vmatpush1.bf16.msra.mxu0 0
    %823 = vmatprep.subr.bf16.mxu0 0
    %824 = vmatpush1.bf16.msra.mxu0 0
    %825 = vmatprep.mubr.bf16.mxu0 0
    %826 = vmatmul.mubr.bf16.gmra.mrb[0].mxu0 %v788
    %v827 = vpop.f32.mrb[0].mxu0
    %v828 = vadd.f32 %v784, %v827
    %v829 = vpop.f32.mrb[0].mxu0
    %v830 = vpop.f32.mrb[0].mxu0
    %v831 = vpop.f32.mrb[0].mxu0
    %832 = vdwg.mxu0
    %v833 = vmax.f32 %v828, 0.0
    %v834 = vpack.c.bf16 %v686, %v686
    %835 = vmatprep.subr.bf16.mxu0 0
    %836 = vmatpush1.bf16.msra.mxu0 %v280
    %837 = vmatprep.subr.bf16.mxu0 0
    %838 = vmatpush1.bf16.msra.mxu0 %v281
    %839 = vmatprep.subr.bf16.mxu0 0
    %840 = vmatpush1.bf16.msra.mxu0 %v282
    %841 = vmatprep.subr.bf16.mxu0 0
    %842 = vmatpush1.bf16.msra.mxu0 %v283
    %843 = vmatprep.subr.bf16.mxu0 0
    %844 = vmatpush1.bf16.msra.mxu0 %v284
    %845 = vmatprep.subr.bf16.mxu0 0
    %846 = vmatpush1.bf16.msra.mxu0 %v285
    %847 = vmatprep.subr.bf16.mxu0 0
    %848 = vmatpush1.bf16.msra.mxu0 %v286
    %849 = vmatprep.subr.bf16.mxu0 0
    %850 = vmatpush1.bf16.msra.mxu0 %v287
    %851 = vmatprep.subr.bf16.mxu0 0
    %852 = vmatpush1.bf16.msra.mxu0 0
    %853 = vmatprep.subr.bf16.mxu0 0
    %854 = vmatpush1.bf16.msra.mxu0 0
    %855 = vmatprep.subr.bf16.mxu0 0
    %856 = vmatpush1.bf16.msra.mxu0 0
    %857 = vmatprep.subr.bf16.mxu0 0
    %858 = vmatpush1.bf16.msra.mxu0 0
    %859 = vmatprep.subr.bf16.mxu0 0
    %860 = vmatpush1.bf16.msra.mxu0 0
    %861 = vmatprep.subr.bf16.mxu0 0
    %862 = vmatpush1.bf16.msra.mxu0 0
    %863 = vmatprep.subr.bf16.mxu0 0
    %864 = vmatpush1.bf16.msra.mxu0 0
    %865 = vmatprep.subr.bf16.mxu0 0
    %866 = vmatpush1.bf16.msra.mxu0 0
    %867 = vmatprep.mubr.bf16.mxu0 0
    %868 = vmatmul.mubr.bf16.gmra.mrb[0].mxu0 %v834
    %v869 = vpop.f32.mrb[0].mxu0
    %v870 = vadd.f32 0.0, %v869
    %v871 = vpop.f32.mrb[0].mxu0
    %v872 = vpop.f32.mrb[0].mxu0
    %v873 = vpop.f32.mrb[0].mxu0
    %874 = vdwg.mxu0
    %v875 = vpack.c.bf16 %v870, %v870
    %876 = vmatprep.subr.bf16.mxu0 0
    %877 = vmatpush1.bf16.msra.mxu0 %v280
    %878 = vmatprep.subr.bf16.mxu0 0
    %879 = vmatpush1.bf16.msra.mxu0 %v281
    %880 = vmatprep.subr.bf16.mxu0 0
    %881 = vmatpush1.bf16.msra.mxu0 %v282
    %882 = vmatprep.subr.bf16.mxu0 0
    %883 = vmatpush1.bf16.msra.mxu0 %v283
    %884 = vmatprep.subr.bf16.mxu0 0
    %885 = vmatpush1.bf16.msra.mxu0 %v284
    %886 = vmatprep.subr.bf16.mxu0 0
    %887 = vmatpush1.bf16.msra.mxu0 %v285
    %888 = vmatprep.subr.bf16.mxu0 0
    %889 = vmatpush1.bf16.msra.mxu0 %v286
    %890 = vmatprep.subr.bf16.mxu0 0
    %891 = vmatpush1.bf16.msra.mxu0 %v287
    %892 = vmatprep.subr.bf16.mxu0 0
    %893 = vmatpush1.bf16.msra.mxu0 0
    %894 = vmatprep.subr.bf16.mxu0 0
    %895 = vmatpush1.bf16.msra.mxu0 0
    %896 = vmatprep.subr.bf16.mxu0 0
    %897 = vmatpush1.bf16.msra.mxu0 0
    %898 = vmatprep.subr.bf16.mxu0 0
    %899 = vmatpush1.bf16.msra.mxu0 0
    %900 = vmatprep.subr.bf16.mxu0 0
    %901 = vmatpush1.bf16.msra.mxu0 0
    %902 = vmatprep.subr.bf16.mxu0 0
    %903 = vmatpush1.bf16.msra.mxu0 0
    %904 = vmatprep.subr.bf16.mxu0 0
    %905 = vmatpush1.bf16.msra.mxu0 0
    %906 = vmatprep.subr.bf16.mxu0 0
    %907 = vmatpush1.bf16.msra.mxu0 0
    %908 = vmatprep.mubr.bf16.mxu0 0
    %909 = vmatmul.mubr.bf16.gmra.mrb[0].mxu0 %v875
    %v910 = vpop.f32.mrb[0].mxu0
    %v911 = vadd.f32 0.0, %v910
    %v912 = vpop.f32.mrb[0].mxu0
    %v913 = vpop.f32.mrb[0].mxu0
    %v914 = vpop.f32.mrb[0].mxu0
    %915 = vdwg.mxu0
    %v916 = vmul.f32 %v911, 2.0
    %v917 = vunpack.c.l.bf16 %v834
    %v918 = vsub.f32 %v916, %v917
    %v919 = vpack.c.bf16 %v918, %v918
    %v921 = vrot.slane %v875, 6
    %v923 = vrot.slane %v919, 4
    %v926 = vsel %vm243, %v834, %v921
    %v928 = vsel %vm383, %v926, %v923
    %v929 = vsel %vm790, %v928, 0
    %931 = vmatprep.subr.bf16.mxu0 0
    %932 = vmatpush1.bf16.msra.mxu0 %v929
    %933 = vmatprep.subr.bf16.mxu0 0
    %934 = vmatpush1.bf16.msra.mxu0 0
    %935 = vmatprep.subr.bf16.mxu0 0
    %936 = vmatpush1.bf16.msra.mxu0 0
    %937 = vmatprep.subr.bf16.mxu0 0
    %938 = vmatpush1.bf16.msra.mxu0 0
    %939 = vmatprep.subr.bf16.mxu0 0
    %940 = vmatpush1.bf16.msra.mxu0 0
    %941 = vmatprep.subr.bf16.mxu0 0
    %942 = vmatpush1.bf16.msra.mxu0 0
    %943 = vmatprep.subr.bf16.mxu0 0
    %944 = vmatpush1.bf16.msra.mxu0 0
    %945 = vmatprep.subr.bf16.mxu0 0
    %946 = vmatpush1.bf16.msra.mxu0 0
    %947 = vmatprep.subr.bf16.mxu0 0
    %948 = vmatpush1.bf16.msra.mxu0 0
    %949 = vmatprep.subr.bf16.mxu0 0
    %950 = vmatpush1.bf16.msra.mxu0 0
    %951 = vmatprep.subr.bf16.mxu0 0
    %952 = vmatpush1.bf16.msra.mxu0 0
    %953 = vmatprep.subr.bf16.mxu0 0
    %954 = vmatpush1.bf16.msra.mxu0 0
    %955 = vmatprep.subr.bf16.mxu0 0
    %956 = vmatpush1.bf16.msra.mxu0 0
    %957 = vmatprep.subr.bf16.mxu0 0
    %958 = vmatpush1.bf16.msra.mxu0 0
    %959 = vmatprep.subr.bf16.mxu0 0
    %960 = vmatpush1.bf16.msra.mxu0 0
    %961 = vmatprep.subr.bf16.mxu0 0
    %962 = vmatpush1.bf16.msra.mxu0 0
    %963 = vmatprep.mubr.bf16.mxu0 0
    %964 = vmatmul.mubr.bf16.gmra.mrb[0].mxu0 %v788
    %v965 = vpop.f32.mrb[0].mxu0
    %v966 = vadd.f32 %v784, %v965
    %v967 = vpop.f32.mrb[0].mxu0
    %v968 = vpop.f32.mrb[0].mxu0
    %v969 = vpop.f32.mrb[0].mxu0
    %970 = vdwg.mxu0
    %v971 = vmax.f32 %v966, 0.0
    %v972 = vmul.f32 %v833, %v32
    %v973 = vsel %vm383, %v972, 0.0
    %974 = vadd.xlane.f32.xlu0 %v973
    %v975 = vpop.xlane.xlu0 %974
    %v976 = vadd.f32 %v975, 0.0
    %v977 = vmul.f32 %v971, %v32
    %v978 = vsel %vm383, %v977, 0.0
    %979 = vadd.xlane.f32.xlu0 %v978
    %v980 = vpop.xlane.xlu0 %979
    %v981 = vadd.f32 %v976, %v980
    %v982 = vmul.f32 %v981, 0.0625
    %v983 = vsub.f32 %v833, %v982
    %v984 = vmul.f32 %v983, %v32
    %v985 = vmul.f32 %v984, %v984
    %v986 = vsel %vm383, %v985, 0.0
    %987 = vadd.xlane.f32.xlu0 %v986
    %v988 = vpop.xlane.xlu0 %987
    %v989 = vadd.f32 %v988, 0.0
    %v990 = vsub.f32 %v971, %v982
    %v991 = vmul.f32 %v990, %v32
    %v992 = vmul.f32 %v991, %v991
    %v993 = vsel %vm383, %v992, 0.0
    %994 = vadd.xlane.f32.xlu0 %v993
    %v995 = vpop.xlane.xlu0 %994
    %v996 = vadd.f32 %v989, %v995
    %v997 = vmul.f32 %v996, 0.0625
    %v998 = vadd.f32 %v997, 1e-05
    %v999 = vrsqrt.pop %v998
    %v1000 = vmul.f32 %v983, %v999
    %1001 = vset.pattern.permute.xlu0 4
    %1002 = vperm.xlu0 %1001, %v83
    %v1003 = vpop.permute.xlu0 %1002
    %v1005 = vmul.f32 %v1000, %v1003
    %1006 = vset.pattern.permute.xlu0 5
    %1007 = vperm.xlu0 %1006, %v83
    %v1008 = vpop.permute.xlu0 %1007
    %v1010 = vadd.f32 %v1005, %v1008
    %v1011 = vmul.f32 %v1010, %v32
    %v1012 = vmul.f32 %v990, %v999
    %v1013 = vmul.f32 %v1012, %v1003
    %v1014 = vadd.f32 %v1013, %v1008
    %v1015 = vmul.f32 %v1014, %v32
    %v1017 = vrot.slane %v1015, 4
    %v1019 = vsel %vm383, %v1011, %v1017
    %1020 = vst [vmem:[#allocation2] sm:$0xff] %v1019
    // Predicated region
    $region30: #{unet_up_block_forward.1} parent=1 // pred_check
      _
    $region31: #{unet_up_block_forward.1} parent=1 // pred_check_branch
      %1022 = sbr.rel (0) target = $region33
    $region32: #{unet_up_block_forward.1} parent=1 // pred_region
      %s1024 = ssub.s32 128, 128
      %1025 = vsyncadd [#allocation3], %s1024
      %s1027 = sshll.u32 [#allocation2], 4
      %s1028 = int_to_ptr.vmem [resolvable:$true] %s1027
      %1030 = dma.vmem_to_hbm [thread:$0]  %s1028, 128, %s7, [#allocation3]
    $region33: #{unet_up_block_forward.1} parent=1 // pred_fallthru
      _
    // Predicated region
    $region34: #{unet_up_block_forward.1} parent=1 // pred_check
      _
    $region35: #{unet_up_block_forward.1} parent=1 // pred_check_branch
      %1032 = sbr.rel (0) target = $region37
    $region36: #{unet_up_block_forward.1} parent=1 // pred_region
      %1033 = dma.done [#allocation3], 128
    $region37: #{unet_up_block_forward.1} parent=1 // pred_fallthru
      _
    %1034 = vsyncpa [#allocation3], 1

</llo_original>
